<compile_context>
chip_gen: v7x
topology: tpu7x:2x2x1
jax: 0.10.0
libtpu: 0.0.40
codegen_flags: <defaults>
</compile_context>

<pallas_src>
import math

import jax
import jax.numpy as jnp
import numpy as np
from jax.experimental import pallas as pl
from jax.experimental.pallas import tpu as pltpu

D_MODEL = 32
NHEAD = 4
HEAD_DIM = D_MODEL // NHEAD
LN_EPS = 1e-5
NEG_INF = -1e30


def _make_kernel(n_batch, has_mask):
    """Fused MHA + residual + LayerNorm for ONE CrossModalAttention invocation (grid step g).

    Refs per grid step:
      p_ref:   (4E+8, E) packed [Wq*scale; Wk; Wv; Wo; bq*scale; bk; bv; bo; gamma; beta; 0; 0]
      q_ref:   (Tq, E)   queries, rows ordered (l, n) -> l*N + n   (seq-first flatten)
      kv_ref:  (Tk, E)   keys == values, rows ordered (s, n) -> s*N + n
      pad_ref: (1, Tk)   additive key-padding bias (present only when has_mask)
      out_ref: (Tq, E)
    """
    n = n_batch

    def kernel(p_ref, q_ref, kv_ref, *rest):
        if has_mask:
            pad_ref, out_ref = rest
        else:
            (out_ref,) = rest

        q_in = q_ref[...].astype(jnp.float32)      # (Tq, E)
        kv_in = kv_ref[...].astype(jnp.float32)    # (Tk, E)
        tq, e = q_in.shape
        tk = kv_in.shape[0]
        h = NHEAD
        dh = e // h

        # Static, sublane-aligned parameter views out of the single packed tensor.
        wq = p_ref[0 * e:1 * e, :]
        wk = p_ref[1 * e:2 * e, :]
        wv = p_ref[2 * e:3 * e, :]
        wo = p_ref[3 * e:4 * e, :]
        bq = p_ref[4 * e + 0:4 * e + 1, :]
        bk = p_ref[4 * e + 1:4 * e + 2, :]
        bv = p_ref[4 * e + 2:4 * e + 3, :]
        bo = p_ref[4 * e + 3:4 * e + 4, :]
        gamma = p_ref[4 * e + 4:4 * e + 5, :]
        beta = p_ref[4 * e + 5:4 * e + 6, :]

        # Input projections (softmax scale folded into Wq/bq at pack time); key == value.
        qp = jnp.dot(q_in, wq, preferred_element_type=jnp.float32) + bq
        kp = jnp.dot(kv_in, wk, preferred_element_type=jnp.float32) + bk
        vp = jnp.dot(kv_in, wv, preferred_element_type=jnp.float32) + bv

        # Head-selection mask over the feature (lane) dim, iota + compares only.
        lane = jax.lax.broadcasted_iota(jnp.int32, (h, tq, e), 2)
        hid = jax.lax.broadcasted_iota(jnp.int32, (h, tq, e), 0)
        head_mask = ((lane >= hid * dh) & (lane < (hid + 1) * dh)).astype(jnp.float32)

        # Per-head scores via one matmul of head-masked queries against all keys.
        q_heads = (qp[None, :, :] * head_mask).reshape(h * tq, e)          # (H*Tq, E)
        scores = jax.lax.dot_general(q_heads, kp, (((1,), (1,)), ((), ())),
                                     preferred_element_type=jnp.float32)   # (H*Tq, Tk)

        # Structural block-diagonal cross-batch mask, generated in-kernel (no DMA'd bias):
        # row r = g_head*Tq + l*N + n_row  ->  r mod N == n_row;  col j = s*N + n_col.
        row = jax.lax.broadcasted_iota(jnp.int32, (h * tq, tk), 0)
        col = jax.lax.broadcasted_iota(jnp.int32, (h * tq, tk), 1)
        if (n & (n - 1)) == 0:
            same_batch = (row & (n - 1)) == (col & (n - 1))
        else:
            same_batch = jax.lax.rem(row, n) == jax.lax.rem(col, n)
        scores = jnp.where(same_batch, scores, NEG_INF)

        if has_mask:
            scores = scores + pad_ref[...]          # (1, Tk) implicit broadcast over rows

        # Softmax over keys; exact EUP reciprocal for normalization.
        scores = scores - jnp.max(scores, axis=-1, keepdims=True)
        p = jnp.exp(scores)
        p = p * pl.reciprocal(jnp.sum(p, axis=-1, keepdims=True))

        # Context per head, then keep each head's own lanes and sum over heads.
        ctx = jnp.dot(p, vp, preferred_element_type=jnp.float32)           # (H*Tq, E)
        attn = jnp.sum(ctx.reshape(h, tq, e) * head_mask, axis=0)          # (Tq, E)

        # Output projection, residual (dropout == identity in eval) and LayerNorm.
        proj = jnp.dot(attn, wo, preferred_element_type=jnp.float32) + bo
        x = q_in + proj
        mean = jnp.mean(x, axis=-1, keepdims=True)
        var = jnp.mean((x - mean) ** 2, axis=-1, keepdims=True)
        y = (x - mean) * jax.lax.rsqrt(var + LN_EPS)
        out_ref[...] = (y * gamma + beta).astype(out_ref.dtype)

    return kernel


def fused_cross_modal_attention(queries, keys_values, params_packed, key_padding_mask=None):
    """All G independent CrossModalAttention invocations in ONE gridded pallas_call.

    queries:          (G, L, N, E)  PyTorch seq-first layout per invocation
    keys_values:      (G, S, N, E)  key == value (the module always calls attn(q, kv, kv))
    params_packed:    (G, 4*E+8, E) per-invocation packed parameters
    key_padding_mask: optional (G, N, S) bool (True = masked key position)
    returns:          (G, L, N, E)
    """
    G, L, N, E = queries.shape
    S = keys_values.shape[1]
    Tq, Tk = L * N, S * N

    # Free row-major reshapes only — no transposes, no dtype casts outside the kernel.
    q3 = queries.reshape(G, Tq, E)
    kv3 = keys_values.reshape(G, Tk, E)

    has_mask = key_padding_mask is not None
    in_arrays = [params_packed, q3, kv3]
    in_specs = [
        pl.BlockSpec((None, 4 * E + 8, E), lambda g: (g, 0, 0)),
        pl.BlockSpec((None, Tq, E), lambda g: (g, 0, 0)),
        pl.BlockSpec((None, Tk, E), lambda g: (g, 0, 0)),
    ]
    if has_mask:
        # Tiny (G, 1, Tk) additive pad bias, flattened to key-row order j = s*N + n.
        pad = jnp.where(key_padding_mask, NEG_INF, 0.0).astype(jnp.float32)   # (G, N, S)
        pad = jnp.transpose(pad, (0, 2, 1)).reshape(G, 1, Tk)
        in_arrays.append(pad)
        in_specs.append(pl.BlockSpec((None, 1, Tk), lambda g: (g, 0, 0)))

    out = pl.pallas_call(
        _make_kernel(N, has_mask),
        grid=(G,),
        in_specs=in_specs,
        out_specs=pl.BlockSpec((None, Tq, E), lambda g: (g, 0, 0)),
        out_shape=jax.ShapeDtypeStruct((G, Tq, E), queries.dtype),
        compiler_params=pltpu.CompilerParams(dimension_semantics=("parallel",)),
    )(*in_arrays)
    return out.reshape(G, L, N, E)


def pack_params(p):
    """Host-side one-time packing into a single (4E+8, E) tensor with the 1/sqrt(head_dim)
    softmax scale folded into Wq/bq.  Layout:
      rows 0:4E        -> [Wq*scale; Wk; Wv; Wo]   (y = x @ W + b convention)
      rows 4E:4E+8     -> [bq*scale, bk, bv, bo, gamma, beta, 0, 0]
    """
    scale = 1.0 / math.sqrt(HEAD_DIM)
    w = jnp.concatenate([p["wq"] * scale, p["wk"], p["wv"], p["wo"]], axis=0)
    zeros = jnp.zeros_like(p["bq"])
    b = jnp.stack([p["bq"] * scale, p["bk"], p["bv"], p["bo"],
                   p["gamma"], p["beta"], zeros, zeros], axis=0)
    return jnp.concatenate([w, b], axis=0).astype(jnp.float32)


def reference_forward(query, key, value, p, key_padding_mask=None):
    """Pure-JAX reference mirroring the PyTorch CrossModalAttention forward (eval mode)."""
    qb = jnp.transpose(query, (1, 0, 2))
    kb = jnp.transpose(key, (1, 0, 2))
    vb = jnp.transpose(value, (1, 0, 2))
    q = qb @ p["wq"] + p["bq"]
    k = kb @ p["wk"] + p["bk"]
    v = vb @ p["wv"] + p["bv"]
    N, L, E = q.shape
    S = k.shape[1]
    qh = q.reshape(N, L, NHEAD, HEAD_DIM).transpose(0, 2, 1, 3)
    kh = k.reshape(N, S, NHEAD, HEAD_DIM).transpose(0, 2, 1, 3)
    vh = v.reshape(N, S, NHEAD, HEAD_DIM).transpose(0, 2, 1, 3)
    scores = jnp.einsum("nhld,nhsd->nhls", qh, kh) / math.sqrt(HEAD_DIM)
    if key_padding_mask is not None:
        scores = scores + jnp.where(key_padding_mask, NEG_INF, 0.0)[:, None, None, :]
    attn = jax.nn.softmax(scores, axis=-1)
    o = jnp.einsum("nhls,nhsd->nhld", attn, vh).transpose(0, 2, 1, 3).reshape(N, L, E)
    attn_out = o @ p["wo"] + p["bo"]
    x = qb + attn_out
    mean = x.mean(-1, keepdims=True)
    var = ((x - mean) ** 2).mean(-1, keepdims=True)
    y = (x - mean) / jnp.sqrt(var + LN_EPS) * p["gamma"] + p["beta"]
    return jnp.transpose(y, (1, 0, 2))


def init_params(key, d_model):
    """Deterministic synthetic parameters (weights stored pre-transposed: y = x @ W + b)."""
    ks = jax.random.split(key, 9)
    scale = 1.0 / math.sqrt(d_model)
    return {
        "wq": jax.random.normal(ks[0], (d_model, d_model), jnp.float32) * scale,
        "wk": jax.random.normal(ks[1], (d_model, d_model), jnp.float32) * scale,
        "wv": jax.random.normal(ks[2], (d_model, d_model), jnp.float32) * scale,
        "wo": jax.random.normal(ks[3], (d_model, d_model), jnp.float32) * scale,
        "bq": jax.random.normal(ks[4], (d_model,), jnp.float32) * 0.02,
        "bk": jax.random.normal(ks[5], (d_model,), jnp.float32) * 0.02,
        "bv": jax.random.normal(ks[6], (d_model,), jnp.float32) * 0.02,
        "bo": jax.random.normal(ks[7], (d_model,), jnp.float32) * 0.02,
        "gamma": 1.0 + 0.1 * jax.random.normal(ks[8], (d_model,), jnp.float32),
        "beta": jnp.zeros((d_model,), jnp.float32),
    }


if __name__ == "__main__":
    # G = 3 mirrors the model's three cross-modal fusion invocations
    # (audio->trans, trans->audio, transcr->trans), each with query length 1
    # (the unsqueezed pooled representation), batch N, key/value length S, d_model E.
    G, L, S, N, E = 3, 1, 8, 2, D_MODEL

    root = jax.random.PRNGKey(0)
    k_q, k_kv, k_p = jax.random.split(root, 3)
    queries = jax.random.normal(k_q, (G, L, N, E), jnp.float32)
    keys_values = jax.random.normal(k_kv, (G, S, N, E), jnp.float32)   # key == value alias
    params_list = [init_params(k, E) for k in jax.random.split(k_p, G)]
    params_packed = jnp.stack([pack_params(p) for p in params_list], axis=0)

    # Unmasked path.
    out = fused_cross_modal_attention(queries, keys_values, params_packed)
    out = jax.block_until_ready(out)
    for g in range(G):
        ref = reference_forward(queries[g], keys_values[g], keys_values[g], params_list[g])
        np.testing.assert_allclose(np.asarray(out[g]), np.asarray(ref), rtol=2e-3, atol=2e-3)

    # Key-padding-mask path (the model always supplies key_padding_mask = (tokens == 0));
    # no fully-masked rows — see NaN note in the header.
    kpm = jnp.zeros((G, N, S), dtype=bool).at[:, 0, S - 2:].set(True)
    out_m = fused_cross_modal_attention(queries, keys_values, params_packed, kpm)
    out_m = jax.block_until_ready(out_m)
    for g in range(G):
        ref_m = reference_forward(queries[g], keys_values[g], keys_values[g],
                                  params_list[g], kpm[g])
        np.testing.assert_allclose(np.asarray(out_m[g]), np.asarray(ref_m),
                                   rtol=2e-3, atol=2e-3)

    print("KERNEL_OK")
</pallas_src>

<mosaic_0001>
module attributes {stable_mosaic.version = 11 : i64} {
  func.func @kernel(%arg0: i32, %arg1: memref<1x136x32xf32, #tpu.memory_space<vmem>>, %arg2: memref<1x2x32xf32, #tpu.memory_space<vmem>>, %arg3: memref<1x16x32xf32, #tpu.memory_space<vmem>>, %arg4: memref<1x2x32xf32, #tpu.memory_space<vmem>>) attributes {dimension_semantics = [#tpu.dimension_semantics<parallel>], iteration_bounds = array<i64: 3>, scalar_prefetch = 0 : i64, scratch_operands = 0 : i64, tpu.core_type = #tpu.core_type<tc>, window_params = [{transform_indices = @transform_0, window_bounds = array<i64: 1, 136, 32>}, {transform_indices = @transform_1, window_bounds = array<i64: 1, 2, 32>}, {transform_indices = @transform_2, window_bounds = array<i64: 1, 16, 32>}, {transform_indices = @transform_3, window_bounds = array<i64: 1, 2, 32>}]} {
    %c0 = arith.constant 0 : index
    %c0_0 = arith.constant 0 : index
    %c0_1 = arith.constant 0 : index
    %0 = vector.load %arg2[%c0, %c0_0, %c0_1] : memref<1x2x32xf32, #tpu.memory_space<vmem>>, vector<1x2x32xf32>
    %1 = vector.shape_cast %0 : vector<1x2x32xf32> to vector<2x32xf32>
    %c0_2 = arith.constant 0 : index
    %c0_3 = arith.constant 0 : index
    %c0_4 = arith.constant 0 : index
    %2 = vector.load %arg3[%c0_2, %c0_3, %c0_4] : memref<1x16x32xf32, #tpu.memory_space<vmem>>, vector<1x16x32xf32>
    %3 = vector.shape_cast %2 : vector<1x16x32xf32> to vector<16x32xf32>
    %c0_5 = arith.constant 0 : index
    %c0_6 = arith.constant 0 : index
    %c0_7 = arith.constant 0 : index
    %4 = vector.load %arg1[%c0_5, %c0_6, %c0_7] : memref<1x136x32xf32, #tpu.memory_space<vmem>>, vector<1x32x32xf32>
    %5 = vector.shape_cast %4 : vector<1x32x32xf32> to vector<32x32xf32>
    %c0_8 = arith.constant 0 : index
    %c32 = arith.constant 32 : index
    %c0_9 = arith.constant 0 : index
    %6 = vector.load %arg1[%c0_8, %c32, %c0_9] : memref<1x136x32xf32, #tpu.memory_space<vmem>>, vector<1x32x32xf32>
    %7 = vector.shape_cast %6 : vector<1x32x32xf32> to vector<32x32xf32>
    %c0_10 = arith.constant 0 : index
    %c64 = arith.constant 64 : index
    %c0_11 = arith.constant 0 : index
    %8 = vector.load %arg1[%c0_10, %c64, %c0_11] : memref<1x136x32xf32, #tpu.memory_space<vmem>>, vector<1x32x32xf32>
    %9 = vector.shape_cast %8 : vector<1x32x32xf32> to vector<32x32xf32>
    %c0_12 = arith.constant 0 : index
    %c96 = arith.constant 96 : index
    %c0_13 = arith.constant 0 : index
    %10 = vector.load %arg1[%c0_12, %c96, %c0_13] : memref<1x136x32xf32, #tpu.memory_space<vmem>>, vector<1x32x32xf32>
    %11 = vector.shape_cast %10 : vector<1x32x32xf32> to vector<32x32xf32>
    %c0_14 = arith.constant 0 : index
    %c128 = arith.constant 128 : index
    %c0_15 = arith.constant 0 : index
    %12 = vector.load %arg1[%c0_14, %c128, %c0_15] : memref<1x136x32xf32, #tpu.memory_space<vmem>>, vector<1x1x32xf32>
    %13 = vector.shape_cast %12 : vector<1x1x32xf32> to vector<1x32xf32>
    %c0_16 = arith.constant 0 : index
    %c129 = arith.constant 129 : index
    %c0_17 = arith.constant 0 : index
    %14 = vector.load %arg1[%c0_16, %c129, %c0_17] : memref<1x136x32xf32, #tpu.memory_space<vmem>>, vector<1x1x32xf32>
    %15 = vector.shape_cast %14 : vector<1x1x32xf32> to vector<1x32xf32>
    %c0_18 = arith.constant 0 : index
    %c130 = arith.constant 130 : index
    %c0_19 = arith.constant 0 : index
    %16 = vector.load %arg1[%c0_18, %c130, %c0_19] : memref<1x136x32xf32, #tpu.memory_space<vmem>>, vector<1x1x32xf32>
    %17 = vector.shape_cast %16 : vector<1x1x32xf32> to vector<1x32xf32>
    %c0_20 = arith.constant 0 : index
    %c131 = arith.constant 131 : index
    %c0_21 = arith.constant 0 : index
    %18 = vector.load %arg1[%c0_20, %c131, %c0_21] : memref<1x136x32xf32, #tpu.memory_space<vmem>>, vector<1x1x32xf32>
    %19 = vector.shape_cast %18 : vector<1x1x32xf32> to vector<1x32xf32>
    %c0_22 = arith.constant 0 : index
    %c132 = arith.constant 132 : index
    %c0_23 = arith.constant 0 : index
    %20 = vector.load %arg1[%c0_22, %c132, %c0_23] : memref<1x136x32xf32, #tpu.memory_space<vmem>>, vector<1x1x32xf32>
    %21 = vector.shape_cast %20 : vector<1x1x32xf32> to vector<1x32xf32>
    %c0_24 = arith.constant 0 : index
    %c133 = arith.constant 133 : index
    %c0_25 = arith.constant 0 : index
    %22 = vector.load %arg1[%c0_24, %c133, %c0_25] : memref<1x136x32xf32, #tpu.memory_space<vmem>>, vector<1x1x32xf32>
    %23 = vector.shape_cast %22 : vector<1x1x32xf32> to vector<1x32xf32>
    %cst = arith.constant dense<0.000000e+00> : vector<2x32xf32>
    %24 = tpu.matmul %1, %5, %cst {dimension_numbers = #tpu.dot_dimension_numbers<[1], [0], [0], [1], [0, 0, 1, 1], [], []>} : vector<2x32xf32>, vector<32x32xf32>, vector<2x32xf32> -> vector<2x32xf32>
    %25 = vector.broadcast %13 : vector<1x32xf32> to vector<2x32xf32>
    %26 = arith.addf %24, %25 : vector<2x32xf32>
    %cst_26 = arith.constant dense<0.000000e+00> : vector<16x32xf32>
    %27 = tpu.matmul %3, %7, %cst_26 {dimension_numbers = #tpu.dot_dimension_numbers<[1], [0], [0], [1], [0, 0, 1, 1], [], []>} : vector<16x32xf32>, vector<32x32xf32>, vector<16x32xf32> -> vector<16x32xf32>
    %28 = vector.broadcast %15 : vector<1x32xf32> to vector<16x32xf32>
    %29 = arith.addf %27, %28 : vector<16x32xf32>
    %cst_27 = arith.constant dense<0.000000e+00> : vector<16x32xf32>
    %30 = tpu.matmul %3, %9, %cst_27 {dimension_numbers = #tpu.dot_dimension_numbers<[1], [0], [0], [1], [0, 0, 1, 1], [], []>} : vector<16x32xf32>, vector<32x32xf32>, vector<16x32xf32> -> vector<16x32xf32>
    %31 = vector.broadcast %17 : vector<1x32xf32> to vector<16x32xf32>
    %32 = arith.addf %30, %31 : vector<16x32xf32>
    %33 = tpu.iota {dimensions = array<i32: 2>} : vector<4x2x32xi32>
    %34 = tpu.iota {dimensions = array<i32: 0>} : vector<4x2x32xi32>
    %c8_i32 = arith.constant 8 : i32
    %35 = vector.broadcast %c8_i32 : i32 to vector<4x2x32xi32>
    %36 = arith.muli %34, %35 : vector<4x2x32xi32>
    %37 = arith.cmpi sge, %33, %36 : vector<4x2x32xi32>
    %c1_i32 = arith.constant 1 : i32
    %38 = vector.broadcast %c1_i32 : i32 to vector<4x2x32xi32>
    %39 = arith.addi %34, %38 : vector<4x2x32xi32>
    %c8_i32_28 = arith.constant 8 : i32
    %40 = vector.broadcast %c8_i32_28 : i32 to vector<4x2x32xi32>
    %41 = arith.muli %39, %40 : vector<4x2x32xi32>
    %42 = arith.cmpi slt, %33, %41 : vector<4x2x32xi32>
    %43 = arith.andi %37, %42 : vector<4x2x32xi1>
    %44 = arith.extui %43 : vector<4x2x32xi1> to vector<4x2x32xi32>
    %45 = arith.sitofp %44 : vector<4x2x32xi32> to vector<4x2x32xf32>
    %46 = vector.shape_cast %26 : vector<2x32xf32> to vector<1x2x32xf32>
    %47 = vector.broadcast %46 : vector<1x2x32xf32> to vector<4x2x32xf32>
    %48 = arith.mulf %47, %45 : vector<4x2x32xf32>
    %49 = vector.shape_cast %48 : vector<4x2x32xf32> to vector<8x32xf32>
    %cst_29 = arith.constant dense<0.000000e+00> : vector<8x16xf32>
    %50 = tpu.matmul %49, %29, %cst_29 {dimension_numbers = #tpu.dot_dimension_numbers<[1], [1], [0], [0], [0, 0, 1, 0], [], []>} : vector<8x32xf32>, vector<16x32xf32>, vector<8x16xf32> -> vector<8x16xf32>
    %51 = tpu.iota {dimensions = array<i32: 0>} : vector<8x16xi32>
    %52 = tpu.iota {dimensions = array<i32: 1>} : vector<8x16xi32>
    %c1_i32_30 = arith.constant 1 : i32
    %53 = vector.broadcast %c1_i32_30 : i32 to vector<8x16xi32>
    %54 = arith.andi %51, %53 : vector<8x16xi32>
    %c1_i32_31 = arith.constant 1 : i32
    %55 = vector.broadcast %c1_i32_31 : i32 to vector<8x16xi32>
    %56 = arith.andi %52, %55 : vector<8x16xi32>
    %57 = arith.cmpi eq, %54, %56 : vector<8x16xi32>
    %cst_32 = arith.constant -1.000000e+30 : f32
    %58 = vector.broadcast %cst_32 : f32 to vector<8x16xf32>
    %59 = arith.select %57, %50, %58 : vector<8x16xi1>, vector<8x16xf32>
    %cst_33 = arith.constant dense<0xFF800000> : vector<8xf32>
    %60 = vector.multi_reduction <maximumf>, %59, %cst_33 [1] : vector<8x16xf32> to vector<8xf32>
    %61 = vector.shape_cast %60 : vector<8xf32> to vector<8x1xf32>
    %62 = vector.broadcast %61 : vector<8x1xf32> to vector<8x16xf32>
    %63 = arith.subf %59, %62 : vector<8x16xf32>
    %64 = math.exp %63 : vector<8x16xf32>
    %cst_34 = arith.constant dense<0.000000e+00> : vector<8xf32>
    %65 = vector.multi_reduction <add>, %64, %cst_34 [1] : vector<8x16xf32> to vector<8xf32>
    %66 = vector.shape_cast %65 : vector<8xf32> to vector<8x1xf32>
    %67 = tpu.reciprocal %66 : vector<8x1xf32> -> vector<8x1xf32>
    %68 = vector.broadcast %67 : vector<8x1xf32> to vector<8x16xf32>
    %69 = arith.mulf %64, %68 : vector<8x16xf32>
    %cst_35 = arith.constant dense<0.000000e+00> : vector<8x32xf32>
    %70 = tpu.matmul %69, %32, %cst_35 {dimension_numbers = #tpu.dot_dimension_numbers<[1], [0], [0], [1], [0, 0, 1, 1], [], []>} : vector<8x16xf32>, vector<16x32xf32>, vector<8x32xf32> -> vector<8x32xf32>
    %71 = vector.shape_cast %70 : vector<8x32xf32> to vector<4x2x32xf32>
    %72 = arith.mulf %71, %45 : vector<4x2x32xf32>
    %cst_36 = arith.constant dense<0.000000e+00> : vector<2x32xf32>
    %73 = vector.multi_reduction <add>, %72, %cst_36 [0] : vector<4x2x32xf32> to vector<2x32xf32>
    %cst_37 = arith.constant dense<0.000000e+00> : vector<2x32xf32>
    %74 = tpu.matmul %73, %11, %cst_37 {dimension_numbers = #tpu.dot_dimension_numbers<[1], [0], [0], [1], [0, 0, 1, 1], [], []>} : vector<2x32xf32>, vector<32x32xf32>, vector<2x32xf32> -> vector<2x32xf32>
    %75 = vector.broadcast %19 : vector<1x32xf32> to vector<2x32xf32>
    %76 = arith.addf %74, %75 : vector<2x32xf32>
    %77 = arith.addf %1, %76 : vector<2x32xf32>
    %cst_38 = arith.constant dense<0.000000e+00> : vector<2xf32>
    %78 = vector.multi_reduction <add>, %77, %cst_38 [1] : vector<2x32xf32> to vector<2xf32>
    %79 = vector.shape_cast %78 : vector<2xf32> to vector<2x1xf32>
    %cst_39 = arith.constant 3.200000e+01 : f32
    %80 = vector.broadcast %cst_39 : f32 to vector<2x1xf32>
    %81 = arith.divf %79, %80 : vector<2x1xf32>
    %82 = vector.broadcast %81 : vector<2x1xf32> to vector<2x32xf32>
    %83 = arith.subf %77, %82 : vector<2x32xf32>
    %84 = arith.mulf %83, %83 : vector<2x32xf32>
    %cst_40 = arith.constant dense<0.000000e+00> : vector<2xf32>
    %85 = vector.multi_reduction <add>, %84, %cst_40 [1] : vector<2x32xf32> to vector<2xf32>
    %86 = vector.shape_cast %85 : vector<2xf32> to vector<2x1xf32>
    %cst_41 = arith.constant 3.200000e+01 : f32
    %87 = vector.broadcast %cst_41 : f32 to vector<2x1xf32>
    %88 = arith.divf %86, %87 : vector<2x1xf32>
    %89 = vector.broadcast %81 : vector<2x1xf32> to vector<2x32xf32>
    %90 = arith.subf %77, %89 : vector<2x32xf32>
    %cst_42 = arith.constant 9.99999974E-6 : f32
    %91 = vector.broadcast %cst_42 : f32 to vector<2x1xf32>
    %92 = arith.addf %88, %91 : vector<2x1xf32>
    %93 = math.rsqrt %92 : vector<2x1xf32>
    %94 = vector.broadcast %93 : vector<2x1xf32> to vector<2x32xf32>
    %95 = arith.mulf %90, %94 : vector<2x32xf32>
    %96 = vector.broadcast %21 : vector<1x32xf32> to vector<2x32xf32>
    %97 = arith.mulf %95, %96 : vector<2x32xf32>
    %98 = vector.broadcast %23 : vector<1x32xf32> to vector<2x32xf32>
    %99 = arith.addf %97, %98 : vector<2x32xf32>
    %c0_43 = arith.constant 0 : index
    %c0_44 = arith.constant 0 : index
    %c0_45 = arith.constant 0 : index
    %100 = vector.load %arg4[%c0_43, %c0_44, %c0_45] : memref<1x2x32xf32, #tpu.memory_space<vmem>>, vector<1x2x32xf32>
    %101 = vector.shape_cast %100 : vector<1x2x32xf32> to vector<2x32xf32>
    %102 = vector.shape_cast %99 : vector<2x32xf32> to vector<1x2x32xf32>
    tpu.vector_store %arg4[%c0_43, %c0_44, %c0_45], %102 {strides = array<i32>} : memref<1x2x32xf32, #tpu.memory_space<vmem>>, vector<1x2x32xf32>,
    return
  }
  func.func @transform_0(%arg0: i32) -> (i32, i32, i32) {
    %c0_i32 = arith.constant 0 : i32
    %c0_i32_0 = arith.constant 0 : i32
    %c0_i32_1 = arith.constant 0 : i32
    return %arg0, %c0_i32, %c0_i32_0 : i32, i32, i32
  }
  func.func @transform_1(%arg0: i32) -> (i32, i32, i32) {
    %c0_i32 = arith.constant 0 : i32
    %c0_i32_0 = arith.constant 0 : i32
    %c0_i32_1 = arith.constant 0 : i32
    return %arg0, %c0_i32, %c0_i32_0 : i32, i32, i32
  }
  func.func @transform_2(%arg0: i32) -> (i32, i32, i32) {
    %c0_i32 = arith.constant 0 : i32
    %c0_i32_0 = arith.constant 0 : i32
    %c0_i32_1 = arith.constant 0 : i32
    return %arg0, %c0_i32, %c0_i32_0 : i32, i32, i32
  }
  func.func @transform_3(%arg0: i32) -> (i32, i32, i32) {
    %c0_i32 = arith.constant 0 : i32
    %c0_i32_0 = arith.constant 0 : i32
    %c0_i32_1 = arith.constant 0 : i32
    return %arg0, %c0_i32, %c0_i32_0 : i32, i32, i32
  }
}

</mosaic_0001>

<llo_original>
// kernel: tpu_custom_call.1
$region0: #{tpu_custom_call.1}
  #allocation0 [shape = 'u32[]', space=smem, size = 0x4, offset = 0x4, fixed_abs, tag = 'smem constant byte address 0x4 - core index']
  #allocation1 [shape = 'u32[144,128]{1,0:T(1,128)}', space=vmem, size = 0x12000, scoped, tag = 'internal scratch']
  %s0 = inlined_call_operand.vmem [shape: f32[3,136,32], index: 0, kind: input, shape index: {}]
  %s1 = inlined_call_operand.vmem [shape: f32[3,2,32], index: 1, kind: input, shape index: {}]
  %s2 = inlined_call_operand.vmem [shape: f32[3,16,32], index: 2, kind: input, shape index: {}]
  %s3 = inlined_call_operand.hbm [shape: f32[3,2,32], index: 3, kind: output, shape index: {}]
  %s4 = sld [smem:[#allocation0]]
  $region45: #{tpu_custom_call.1} parent=0
    _
  %s6 = ssub.s32 1, %s4
  %s7 = scalar_select 0, %s6, %s4
  $region1: #{tpu_custom_call.1} parent=0
    #allocation2 [shape = 'u8[2048]{0}', space=vmem, size = 0x800, scoped, tag = 'output window, operand 0']
    #allocation3 [shape = 's32[2]{0}', space=sflag, size = 0x8, scoped, tag = 'scoped memory for tpu_custom_call.1']
    %8 = vsyncpa [#allocation3], 0
    %s9 = scalar_lea.sflag [#allocation3], 1
    %10 = vsyncpa %s9, 0
    loop: start=0, step=1, limit=5
    $region2: #{tpu_custom_call.1} parent=1 // loop_pre_header
      _
    $region3: #{tpu_custom_call.1} parent=1 // loop_header
      %s12 = sphi 0, %s16
      %p13 = scmp.ge.s32.totalorder %s12, 5
      %s22 = sphi 0, %s24
      %s25 = sphi 0, %s22
      %s26 = sphi 0, %s25
      %s42 = sphi 0, %s26
      %s48 = sphi 0, %s50
      %s51 = sphi 0, %s48
      %s52 = sphi 0, %s51
      %s68 = sphi 0, %s52
      %s74 = sphi 0, %s76
      %s77 = sphi 0, %s74
      %s78 = sphi 0, %s77
      %s94 = sphi 0, %s78
      %s100 = sphi 0, %s102
      %s103 = sphi 0, %s100
      %s104 = sphi 0, %s103
      %s120 = sphi 0, %s104
    $region4: #{tpu_custom_call.1} parent=1 // loop_header_branch
      %15 = sbr.rel (%p13) target = $region8
    $region5: #{tpu_custom_call.1} parent=1 // loop_body
      %s17 = ssub.s32 %s12, 1
      %s18 = ssub.s32 %s12, 2
      %s19 = sadd.s32 %s12, 1
      %s20 = ssub.s32 %s12, %s19
      %p21 = scmp.eq.s32.totalorder %s20, 0
      %s23 = sadd.s32 %s22, 1
      %s24 = scalar_select %p21, %s22, %s23
      %p27 = pneg %p21
      %p28 = scmp.eq.s32.totalorder %s12, 2
      %p29 = por %p27, %p28
      %p30 = scmp.ne.s32.totalorder %s22, %s25
      %p31 = scmp.eq.s32.totalorder %s12, 0
      %p32 = por %p30, %p31
      %p33 = scmp.ne.s32.totalorder %s22, %s25
      %p34 = scmp.eq.s32.totalorder %s17, 2
      %p35 = por %p33, %p34
      %p36 = scmp.ne.s32.totalorder %s25, %s26
      %p37 = scmp.eq.s32.totalorder %s17, 0
      %p38 = por %p36, %p37
      %p39 = scmp.ne.s32.totalorder %s25, %s26
      %p40 = scmp.eq.s32.totalorder %s18, 2
      %p41 = por %p39, %p40
      %p43 = scmp.ne.s32.totalorder %s26, %s42
      %p44 = scmp.eq.s32.totalorder %s18, 0
      %p45 = por %p43, %p44
      %s46 = ssub.s32 %s12, %s19
      %p47 = scmp.eq.s32.totalorder %s46, 0
      %s49 = sadd.s32 %s48, 1
      %s50 = scalar_select %p47, %s48, %s49
      %p53 = pneg %p47
      %p54 = scmp.eq.s32.totalorder %s12, 2
      %p55 = por %p53, %p54
      %p56 = scmp.ne.s32.totalorder %s48, %s51
      %p57 = scmp.eq.s32.totalorder %s12, 0
      %p58 = por %p56, %p57
      %p59 = scmp.ne.s32.totalorder %s48, %s51
      %p60 = scmp.eq.s32.totalorder %s17, 2
      %p61 = por %p59, %p60
      %p62 = scmp.ne.s32.totalorder %s51, %s52
      %p63 = scmp.eq.s32.totalorder %s17, 0
      %p64 = por %p62, %p63
      %p65 = scmp.ne.s32.totalorder %s51, %s52
      %p66 = scmp.eq.s32.totalorder %s18, 2
      %p67 = por %p65, %p66
      %p69 = scmp.ne.s32.totalorder %s52, %s68
      %p70 = scmp.eq.s32.totalorder %s18, 0
      %p71 = por %p69, %p70
      %s72 = ssub.s32 %s12, %s19
      %p73 = scmp.eq.s32.totalorder %s72, 0
      %s75 = sadd.s32 %s74, 1
      %s76 = scalar_select %p73, %s74, %s75
      %p79 = pneg %p73
      %p80 = scmp.eq.s32.totalorder %s12, 2
      %p81 = por %p79, %p80
      %p82 = scmp.ne.s32.totalorder %s74, %s77
      %p83 = scmp.eq.s32.totalorder %s12, 0
      %p84 = por %p82, %p83
      %p85 = scmp.ne.s32.totalorder %s74, %s77
      %p86 = scmp.eq.s32.totalorder %s17, 2
      %p87 = por %p85, %p86
      %p88 = scmp.ne.s32.totalorder %s77, %s78
      %p89 = scmp.eq.s32.totalorder %s17, 0
      %p90 = por %p88, %p89
      %p91 = scmp.ne.s32.totalorder %s77, %s78
      %p92 = scmp.eq.s32.totalorder %s18, 2
      %p93 = por %p91, %p92
      %p95 = scmp.ne.s32.totalorder %s78, %s94
      %p96 = scmp.eq.s32.totalorder %s18, 0
      %p97 = por %p95, %p96
      %s98 = ssub.s32 %s12, %s19
      %p99 = scmp.eq.s32.totalorder %s98, 0
      %s101 = sadd.s32 %s100, 1
      %s102 = scalar_select %p99, %s100, %s101
      %p105 = pneg %p99
      %p106 = scmp.eq.s32.totalorder %s12, 2
      %p107 = por %p105, %p106
      %p108 = scmp.ne.s32.totalorder %s100, %s103
      %p109 = scmp.eq.s32.totalorder %s12, 0
      %p110 = por %p108, %p109
      %p111 = scmp.ne.s32.totalorder %s100, %s103
      %p112 = scmp.eq.s32.totalorder %s17, 2
      %p113 = por %p111, %p112
      %p114 = scmp.ne.s32.totalorder %s103, %s104
      %p115 = scmp.eq.s32.totalorder %s17, 0
      %p116 = por %p114, %p115
      %p117 = scmp.ne.s32.totalorder %s103, %s104
      %p118 = scmp.eq.s32.totalorder %s18, 2
      %p119 = por %p117, %p118
      %p121 = scmp.ne.s32.totalorder %s104, %s120
      %p122 = scmp.eq.s32.totalorder %s18, 0
      %p123 = por %p121, %p122
      %p124 = scmp.le.s32.totalorder 1, %s12
      %p125 = scmp.lt.s32.totalorder %s12, 4
      %p126 = pnand %p124, %p125
      %p127 = pneg %p126
      // Predicated region
      $region9: #{tpu_custom_call.1} parent=5 // pred_check
        _
      $region10: #{tpu_custom_call.1} parent=5 // pred_check_branch
        %129 = sbr.rel (%p126) target = $region12
      $region11: #{tpu_custom_call.1} parent=5 // pred_region
        %s130 = ssub.s32 %s12, 1
      $region12: #{tpu_custom_call.1} parent=5 // pred_fallthru
        _
      %p131 = scmp.lt.s32.totalorder %s12, 3
      // Predicated region
      $region13: #{tpu_custom_call.1} parent=5 // pred_check
        %p132 = pneg %p131
      $region14: #{tpu_custom_call.1} parent=5 // pred_check_branch
        %134 = sbr.rel (%p132) target = $region16
      $region15: #{tpu_custom_call.1} parent=5 // pred_region
        // Predicated region
        $region17: #{tpu_custom_call.1} parent=15 // pred_check
          %p135 = pneg %p32
        $region18: #{tpu_custom_call.1} parent=15 // pred_check_branch
          %137 = sbr.rel (%p135) target = $region20
        $region19: #{tpu_custom_call.1} parent=15 // pred_region
          %p138 = scmp.lt.s32.totalorder %s12, 2
          %s139 = scalar_select %p138, %s12, 2
          %s140 = smul.addr %s139, 17
          %s141 = smul.addr %s140, 8
          %s142 = scalar_lea.vmem %s0, %s141
        $region20: #{tpu_custom_call.1} parent=15 // pred_fallthru
          _
        // Predicated region
        $region21: #{tpu_custom_call.1} parent=15 // pred_check
          %p143 = pneg %p58
        $region22: #{tpu_custom_call.1} parent=15 // pred_check_branch
          %145 = sbr.rel (%p143) target = $region24
        $region23: #{tpu_custom_call.1} parent=15 // pred_region
          %p146 = scmp.lt.s32.totalorder %s12, 2
          %s147 = scalar_select %p146, %s12, 2
          %s148 = smul.addr %s147, 2
          %s149 = scalar_lea.vmem %s1, %s148
        $region24: #{tpu_custom_call.1} parent=15 // pred_fallthru
          _
        // Predicated region
        $region25: #{tpu_custom_call.1} parent=15 // pred_check
          %p150 = pneg %p84
        $region26: #{tpu_custom_call.1} parent=15 // pred_check_branch
          %152 = sbr.rel (%p150) target = $region28
        $region27: #{tpu_custom_call.1} parent=15 // pred_region
          %p153 = scmp.lt.s32.totalorder %s12, 2
          %s154 = scalar_select %p153, %s12, 2
          %s155 = smul.addr %s154, 2
          %s156 = smul.addr %s155, 8
          %s157 = scalar_lea.vmem %s2, %s156
        $region28: #{tpu_custom_call.1} parent=15 // pred_fallthru
          _
      $region16: #{tpu_custom_call.1} parent=5 // pred_fallthru
        _
      %p158 = scmp.le.s32.totalorder 1, %s12
      %p159 = scmp.lt.s32.totalorder %s12, 4
      %p160 = pnand %p158, %p159
      %p161 = pneg %p160
      // Predicated region
      $region29: #{tpu_custom_call.1} parent=5 // pred_check
        _
      $region30: #{tpu_custom_call.1} parent=5 // pred_check_branch
        %163 = sbr.rel (%p160) target = $region32
      $region31: #{tpu_custom_call.1} parent=5 // pred_region
        %s164 = ssub.s32 %s12, 1
        %p165 = scmp.lt.s32.totalorder %s17, 2
        %s166 = scalar_select %p165, %s17, 2
        %s167 = smul.addr %s166, 17
        %s168 = smul.addr %s167, 8
        %s169 = scalar_lea.vmem %s0, %s168
        %p170 = pneg %p38
        %p171 = pneg %p35
        %p172 = scmp.lt.s32.totalorder %s17, 2
        %s173 = scalar_select %p172, %s17, 2
        %s174 = smul.addr %s173, 2
        %s175 = scalar_lea.vmem %s1, %s174
        %p176 = pneg %p64
        %p177 = pneg %p61
        %p178 = scmp.lt.s32.totalorder %s17, 2
        %s179 = scalar_select %p178, %s17, 2
        %s180 = smul.addr %s179, 2
        %s181 = smul.addr %s180, 8
        %s182 = scalar_lea.vmem %s2, %s181
        %p183 = pneg %p90
        %p184 = pneg %p87
        %p185 = pneg %p116
        %p186 = pneg %p113
        %s187 = sand.u32 %s103, 1
        %s188 = scalar_lea.sflag [#allocation3], %s187
        %s189 = sand.u32 %s103, 1
        %s190 = smul.addr %s189, 2
        %s191 = scalar_lea.vmem [#allocation2], %s190
        %p192 = scmp.lt.s32.totalorder %s17, 2
        %s193 = scalar_select %p192, %s17, 2
        %s194 = smul.addr %s193, 17
        %s195 = smul.addr %s194, 8
        %s196 = scalar_lea.vmem %s0, %s195
        %p197 = scmp.lt.s32.totalorder %s17, 2
        %s198 = scalar_select %p197, %s17, 2
        %s199 = smul.addr %s198, 2
        %s200 = scalar_lea.vmem %s1, %s199
        %p201 = scmp.lt.s32.totalorder %s17, 2
        %s202 = scalar_select %p201, %s17, 2
        %s203 = smul.addr %s202, 2
        %s204 = smul.addr %s203, 8
        %s205 = scalar_lea.vmem %s2, %s204
        %v206 = vld [vmem:[%s200] sm:$0x3]
        %v207 = vld [vmem:[%s205] sm:$0xff]
        %v208 = vld [vmem:[%s205 + $0x8] sm:$0xff]
        %v209 = vld [vmem:[%s196] sm:$0xff]
        %v210 = vld [vmem:[%s196 + $0x8] sm:$0xff]
        %v211 = vld [vmem:[%s196 + $0x10] sm:$0xff]
        %v212 = vld [vmem:[%s196 + $0x18] sm:$0xff]
        %v213 = vld [vmem:[%s196 + $0x20] sm:$0xff]
        %v214 = vld [vmem:[%s196 + $0x28] sm:$0xff]
        %v215 = vld [vmem:[%s196 + $0x30] sm:$0xff]
        %v216 = vld [vmem:[%s196 + $0x38] sm:$0xff]
        %v217 = vld [vmem:[%s196 + $0x40] sm:$0xff]
        %v218 = vld [vmem:[%s196 + $0x48] sm:$0xff]
        %v219 = vld [vmem:[%s196 + $0x50] sm:$0xff]
        %v220 = vld [vmem:[%s196 + $0x58] sm:$0xff]
        %v221 = vld [vmem:[%s196 + $0x60] sm:$0xff]
        %v222 = vld [vmem:[%s196 + $0x68] sm:$0xff]
        %v223 = vld [vmem:[%s196 + $0x70] sm:$0xff]
        %v224 = vld [vmem:[%s196 + $0x78] sm:$0xff]
        %v225 = vld [vmem:[%s196 + $0x80] sm:$0x1]
        %v226 = vld [vmem:[%s196 + $0x81] sm:$0x1]
        %v227 = vld [vmem:[%s196 + $0x82] sm:$0x1]
        %v228 = vld [vmem:[%s196 + $0x83] sm:$0x1]
        %v229 = vld [vmem:[%s196 + $0x84] sm:$0x1]
        %v230 = vld [vmem:[%s196 + $0x85] sm:$0x1]
        %v231 = vlaneseq
        %v232 = vshrl.u32 %v231, 7
        %v233 = vsub.s32 0, %v232
        %v234 = vrot.slane %v225, %v233
        %vm235 = vcmask 261120
        %v237 = vsel %vm235, %v206, 0
        %239 = vmatprep.subr.mxu0 0.0
        %240 = vmatpush1.msra.mxu0 %v209
        %241 = vmatprep.subr.mxu0 0.0
        %242 = vmatpush1.msra.mxu0 %v210
        %243 = vmatprep.subr.mxu0 0.0
        %244 = vmatpush1.msra.mxu0 %v211
        %245 = vmatprep.subr.mxu0 0.0
        %246 = vmatpush1.msra.mxu0 %v212
        %247 = vmatprep.subr.mxu0 0.0
        %248 = vmatpush1.msra.mxu0 0.0
        %249 = vmatprep.subr.mxu0 0.0
        %250 = vmatpush1.msra.mxu0 0.0
        %251 = vmatprep.subr.mxu0 0.0
        %252 = vmatpush1.msra.mxu0 0.0
        %253 = vmatprep.subr.mxu0 0.0
        %254 = vmatpush1.msra.mxu0 0.0
        %255 = vmatprep.subr.mxu0 0.0
        %256 = vmatpush1.msra.mxu0 0.0
        %257 = vmatprep.subr.mxu0 0.0
        %258 = vmatpush1.msra.mxu0 0.0
        %259 = vmatprep.subr.mxu0 0.0
        %260 = vmatpush1.msra.mxu0 0.0
        %261 = vmatprep.subr.mxu0 0.0
        %262 = vmatpush1.msra.mxu0 0.0
        %263 = vmatprep.subr.mxu0 0.0
        %264 = vmatpush1.msra.mxu0 0.0
        %265 = vmatprep.subr.mxu0 0.0
        %266 = vmatpush1.msra.mxu0 0.0
        %267 = vmatprep.subr.mxu0 0.0
        %268 = vmatpush1.msra.mxu0 0.0
        %269 = vmatprep.subr.mxu0 0.0
        %270 = vmatpush1.msra.mxu0 0.0
        %271 = vmatprep.subr.mxu0 0.0
        %272 = vmatpush1.msra.mxu0 0.0
        %273 = vmatprep.subr.mxu0 0.0
        %274 = vmatpush1.msra.mxu0 0.0
        %275 = vmatprep.subr.mxu0 0.0
        %276 = vmatpush1.msra.mxu0 0.0
        %277 = vmatprep.subr.mxu0 0.0
        %278 = vmatpush1.msra.mxu0 0.0
        %279 = vmatprep.subr.mxu0 0.0
        %280 = vmatpush1.msra.mxu0 0.0
        %281 = vmatprep.subr.mxu0 0.0
        %282 = vmatpush1.msra.mxu0 0.0
        %283 = vmatprep.subr.mxu0 0.0
        %284 = vmatpush1.msra.mxu0 0.0
        %285 = vmatprep.subr.mxu0 0.0
        %286 = vmatpush1.msra.mxu0 0.0
        %287 = vmatprep.subr.mxu0 0.0
        %288 = vmatpush1.msra.mxu0 0.0
        %289 = vmatprep.subr.mxu0 0.0
        %290 = vmatpush1.msra.mxu0 0.0
        %291 = vmatprep.subr.mxu0 0.0
        %292 = vmatpush1.msra.mxu0 0.0
        %293 = vmatprep.subr.mxu0 0.0
        %294 = vmatpush1.msra.mxu0 0.0
        %295 = vmatprep.subr.mxu0 0.0
        %296 = vmatpush1.msra.mxu0 0.0
        %297 = vmatprep.subr.mxu0 0.0
        %298 = vmatpush1.msra.mxu0 0.0
        %299 = vmatprep.subr.mxu0 0.0
        %300 = vmatpush1.msra.mxu0 0.0
        %301 = vmatprep.subr.mxu0 0.0
        %302 = vmatpush1.msra.mxu0 0.0
        %303 = vmatprep.mubr.f32.mxu0 0.0
        %304 = vmatmul.mubr.f32.gmra.mrb[0].mxu0 %v237
        %v305 = vpop.f32.mrb[0].mxu0
        %v306 = vadd.f32 %v234, %v305
        %v307 = vpop.f32.mrb[0].mxu0
        %308 = vdwg.mxu0
        %v309 = vlaneseq
        %v310 = vshrl.u32 %v309, 7
        %v311 = vsub.s32 0, %v310
        %v312 = vrot.slane %v226, %v311
        %v314 = vsel %vm235, %v207, 0
        %v317 = vsel %vm235, %v208, 0
        %319 = vmatprep.subr.mxu0 0.0
        %320 = vmatpush1.msra.mxu0 %v213
        %321 = vmatprep.subr.mxu0 0.0
        %322 = vmatpush1.msra.mxu0 %v214
        %323 = vmatprep.subr.mxu0 0.0
        %324 = vmatpush1.msra.mxu0 %v215
        %325 = vmatprep.subr.mxu0 0.0
        %326 = vmatpush1.msra.mxu0 %v216
        %327 = vmatprep.subr.mxu0 0.0
        %328 = vmatpush1.msra.mxu0 0.0
        %329 = vmatprep.subr.mxu0 0.0
        %330 = vmatpush1.msra.mxu0 0.0
        %331 = vmatprep.subr.mxu0 0.0
        %332 = vmatpush1.msra.mxu0 0.0
        %333 = vmatprep.subr.mxu0 0.0
        %334 = vmatpush1.msra.mxu0 0.0
        %335 = vmatprep.subr.mxu0 0.0
        %336 = vmatpush1.msra.mxu0 0.0
        %337 = vmatprep.subr.mxu0 0.0
        %338 = vmatpush1.msra.mxu0 0.0
        %339 = vmatprep.subr.mxu0 0.0
        %340 = vmatpush1.msra.mxu0 0.0
        %341 = vmatprep.subr.mxu0 0.0
        %342 = vmatpush1.msra.mxu0 0.0
        %343 = vmatprep.subr.mxu0 0.0
        %344 = vmatpush1.msra.mxu0 0.0
        %345 = vmatprep.subr.mxu0 0.0
        %346 = vmatpush1.msra.mxu0 0.0
        %347 = vmatprep.subr.mxu0 0.0
        %348 = vmatpush1.msra.mxu0 0.0
        %349 = vmatprep.subr.mxu0 0.0
        %350 = vmatpush1.msra.mxu0 0.0
        %351 = vmatprep.subr.mxu0 0.0
        %352 = vmatpush1.msra.mxu0 0.0
        %353 = vmatprep.subr.mxu0 0.0
        %354 = vmatpush1.msra.mxu0 0.0
        %355 = vmatprep.subr.mxu0 0.0
        %356 = vmatpush1.msra.mxu0 0.0
        %357 = vmatprep.subr.mxu0 0.0
        %358 = vmatpush1.msra.mxu0 0.0
        %359 = vmatprep.subr.mxu0 0.0
        %360 = vmatpush1.msra.mxu0 0.0
        %361 = vmatprep.subr.mxu0 0.0
        %362 = vmatpush1.msra.mxu0 0.0
        %363 = vmatprep.subr.mxu0 0.0
        %364 = vmatpush1.msra.mxu0 0.0
        %365 = vmatprep.subr.mxu0 0.0
        %366 = vmatpush1.msra.mxu0 0.0
        %367 = vmatprep.subr.mxu0 0.0
        %368 = vmatpush1.msra.mxu0 0.0
        %369 = vmatprep.subr.mxu0 0.0
        %370 = vmatpush1.msra.mxu0 0.0
        %371 = vmatprep.subr.mxu0 0.0
        %372 = vmatpush1.msra.mxu0 0.0
        %373 = vmatprep.subr.mxu0 0.0
        %374 = vmatpush1.msra.mxu0 0.0
        %375 = vmatprep.subr.mxu0 0.0
        %376 = vmatpush1.msra.mxu0 0.0
        %377 = vmatprep.subr.mxu0 0.0
        %378 = vmatpush1.msra.mxu0 0.0
        %379 = vmatprep.subr.mxu0 0.0
        %380 = vmatpush1.msra.mxu0 0.0
        %381 = vmatprep.subr.mxu0 0.0
        %382 = vmatpush1.msra.mxu0 0.0
        %383 = vmatprep.mubr.f32.mxu0 0.0
        %384 = vmatmul.mubr.f32.gmra.mrb[0].mxu0 %v314
        %v385 = vpop.f32.mrb[0].mxu0
        %v386 = vadd.f32 %v312, %v385
        %v387 = vpop.f32.mrb[0].mxu0
        %388 = vmatprep.mubr.f32.mxu0 0.0
        %389 = vmatmul.mubr.f32.gmra.mrb[0].mxu0 %v317
        %v390 = vpop.f32.mrb[0].mxu0
        %v391 = vadd.f32 %v312, %v390
        %v392 = vpop.f32.mrb[0].mxu0
        %393 = vdwg.mxu0
        %v394 = vlaneseq
        %v395 = vshrl.u32 %v394, 7
        %v396 = vsub.s32 0, %v395
        %v397 = vrot.slane %v227, %v396
        %398 = vmatprep.subr.mxu0 0.0
        %399 = vmatpush1.msra.mxu0 %v217
        %400 = vmatprep.subr.mxu0 0.0
        %401 = vmatpush1.msra.mxu0 %v218
        %402 = vmatprep.subr.mxu0 0.0
        %403 = vmatpush1.msra.mxu0 %v219
        %404 = vmatprep.subr.mxu0 0.0
        %405 = vmatpush1.msra.mxu0 %v220
        %406 = vmatprep.subr.mxu0 0.0
        %407 = vmatpush1.msra.mxu0 0.0
        %408 = vmatprep.subr.mxu0 0.0
        %409 = vmatpush1.msra.mxu0 0.0
        %410 = vmatprep.subr.mxu0 0.0
        %411 = vmatpush1.msra.mxu0 0.0
        %412 = vmatprep.subr.mxu0 0.0
        %413 = vmatpush1.msra.mxu0 0.0
        %414 = vmatprep.subr.mxu0 0.0
        %415 = vmatpush1.msra.mxu0 0.0
        %416 = vmatprep.subr.mxu0 0.0
        %417 = vmatpush1.msra.mxu0 0.0
        %418 = vmatprep.subr.mxu0 0.0
        %419 = vmatpush1.msra.mxu0 0.0
        %420 = vmatprep.subr.mxu0 0.0
        %421 = vmatpush1.msra.mxu0 0.0
        %422 = vmatprep.subr.mxu0 0.0
        %423 = vmatpush1.msra.mxu0 0.0
        %424 = vmatprep.subr.mxu0 0.0
        %425 = vmatpush1.msra.mxu0 0.0
        %426 = vmatprep.subr.mxu0 0.0
        %427 = vmatpush1.msra.mxu0 0.0
        %428 = vmatprep.subr.mxu0 0.0
        %429 = vmatpush1.msra.mxu0 0.0
        %430 = vmatprep.subr.mxu0 0.0
        %431 = vmatpush1.msra.mxu0 0.0
        %432 = vmatprep.subr.mxu0 0.0
        %433 = vmatpush1.msra.mxu0 0.0
        %434 = vmatprep.subr.mxu0 0.0
        %435 = vmatpush1.msra.mxu0 0.0
        %436 = vmatprep.subr.mxu0 0.0
        %437 = vmatpush1.msra.mxu0 0.0
        %438 = vmatprep.subr.mxu0 0.0
        %439 = vmatpush1.msra.mxu0 0.0
        %440 = vmatprep.subr.mxu0 0.0
        %441 = vmatpush1.msra.mxu0 0.0
        %442 = vmatprep.subr.mxu0 0.0
        %443 = vmatpush1.msra.mxu0 0.0
        %444 = vmatprep.subr.mxu0 0.0
        %445 = vmatpush1.msra.mxu0 0.0
        %446 = vmatprep.subr.mxu0 0.0
        %447 = vmatpush1.msra.mxu0 0.0
        %448 = vmatprep.subr.mxu0 0.0
        %449 = vmatpush1.msra.mxu0 0.0
        %450 = vmatprep.subr.mxu0 0.0
        %451 = vmatpush1.msra.mxu0 0.0
        %452 = vmatprep.subr.mxu0 0.0
        %453 = vmatpush1.msra.mxu0 0.0
        %454 = vmatprep.subr.mxu0 0.0
        %455 = vmatpush1.msra.mxu0 0.0
        %456 = vmatprep.subr.mxu0 0.0
        %457 = vmatpush1.msra.mxu0 0.0
        %458 = vmatprep.subr.mxu0 0.0
        %459 = vmatpush1.msra.mxu0 0.0
        %460 = vmatprep.subr.mxu0 0.0
        %461 = vmatpush1.msra.mxu0 0.0
        %462 = vmatprep.mubr.f32.mxu0 0.0
        %463 = vmatmul.mubr.f32.gmra.mrb[0].mxu0 %v314
        %v464 = vpop.f32.mrb[0].mxu0
        %v465 = vadd.f32 %v397, %v464
        %v466 = vpop.f32.mrb[0].mxu0
        %467 = vmatprep.mubr.f32.mxu0 0.0
        %468 = vmatmul.mubr.f32.gmra.mrb[0].mxu0 %v317
        %v469 = vpop.f32.mrb[0].mxu0
        %v470 = vadd.f32 %v397, %v469
        %v471 = vpop.f32.mrb[0].mxu0
        %472 = vdwg.mxu0
        %v473 = vlaneseq
        %v474 = vand.u32 %v473, 127
        %vm475 = vcmp.ge.s32.totalorder %v474, 0
        %vm476 = vcmp.ge.s32.totalorder %v474, 8
        %vm477 = vcmp.ge.s32.totalorder %v474, 16
        %vm478 = vcmp.ge.s32.totalorder %v474, 24
        %vm479 = vcmp.lt.s32.totalorder %v474, 8
        %vm480 = vcmp.lt.s32.totalorder %v474, 16
        %vm481 = vcmp.lt.s32.totalorder %v474, 24
        %vm482 = vcmp.lt.s32.totalorder %v474, 32
        %vm483 = vmand %vm475, %vm479
        %vm484 = vmand %vm476, %vm480
        %vm485 = vmand %vm477, %vm481
        %vm486 = vmand %vm478, %vm482
        %v487 = vsel %vm483, 1, 0
        %v488 = vsel %vm484, 1, 0
        %v489 = vsel %vm485, 1, 0
        %v490 = vsel %vm486, 1, 0
        %v491 = vcvt.s32.f32 %v487
        %v492 = vcvt.s32.f32 %v488
        %v493 = vcvt.s32.f32 %v489
        %v494 = vcvt.s32.f32 %v490
        %v495 = vmul.f32 %v306, %v491
        %v496 = vmul.f32 %v306, %v492
        %v497 = vmul.f32 %v306, %v493
        %v498 = vmul.f32 %v306, %v494
        %v503 = vcombine.low %v495, %v496
        %v504 = vcombine.low %v497, %v498
        %v506 = vunpack.c.l.s4 1983009808
        %v507 = vunpack.c.0.s8 %v506
        %v508 = vlaneseq
        %v509 = vshrl.u32 %v508, 7
        %v510 = vsub.s32 %v507, %v509
        %v511 = vrot.slane %v503, %v510
        %v513 = vunpack.c.l.s4 1983009808
        %v514 = vunpack.c.0.s8 %v513
        %v515 = vlaneseq
        %v516 = vshrl.u32 %v515, 7
        %v517 = vsub.s32 %v514, %v516
        %v518 = vrot.slane %v504, %v517
        %v519 = vcombine.low %v511, %v518
        %v520 = vsel %vm235, %v519, 0
        %v523 = vsel %vm235, %v386, 0
        %v526 = vsel %vm235, %v391, 0
        %528 = vmatprep.subr.mxu0 0.0
        %529 = vmatpush1.xpose.msra.mxu0 %v523
        %530 = vmatprep.subr.mxu0 0.0
        %531 = vmatpush1.xpose.msra.mxu0 %v526
        %532 = vmatprep.subr.mxu0 0.0
        %533 = vmatpush1.xpose.msra.mxu0 0.0
        %534 = vmatprep.subr.mxu0 0.0
        %535 = vmatpush1.xpose.msra.mxu0 0.0
        %536 = vmatprep.subr.mxu0 0.0
        %537 = vmatpush1.xpose.msra.mxu0 0.0
        %538 = vmatprep.subr.mxu0 0.0
        %539 = vmatpush1.xpose.msra.mxu0 0.0
        %540 = vmatprep.subr.mxu0 0.0
        %541 = vmatpush1.xpose.msra.mxu0 0.0
        %542 = vmatprep.subr.mxu0 0.0
        %543 = vmatpush1.xpose.msra.mxu0 0.0
        %544 = vmatprep.subr.mxu0 0.0
        %545 = vmatpush1.xpose.msra.mxu0 0.0
        %546 = vmatprep.subr.mxu0 0.0
        %547 = vmatpush1.xpose.msra.mxu0 0.0
        %548 = vmatprep.subr.mxu0 0.0
        %549 = vmatpush1.xpose.msra.mxu0 0.0
        %550 = vmatprep.subr.mxu0 0.0
        %551 = vmatpush1.xpose.msra.mxu0 0.0
        %552 = vmatprep.subr.mxu0 0.0
        %553 = vmatpush1.xpose.msra.mxu0 0.0
        %554 = vmatprep.subr.mxu0 0.0
        %555 = vmatpush1.xpose.msra.mxu0 0.0
        %556 = vmatprep.subr.mxu0 0.0
        %557 = vmatpush1.xpose.msra.mxu0 0.0
        %558 = vmatprep.subr.mxu0 0.0
        %559 = vmatpush1.xpose.msra.mxu0 0.0
        %560 = vmatprep.subr.mxu0 0.0
        %561 = vmatpush1.xpose.msra.mxu0 0.0
        %562 = vmatprep.subr.mxu0 0.0
        %563 = vmatpush1.xpose.msra.mxu0 0.0
        %564 = vmatprep.subr.mxu0 0.0
        %565 = vmatpush1.xpose.msra.mxu0 0.0
        %566 = vmatprep.subr.mxu0 0.0
        %567 = vmatpush1.xpose.msra.mxu0 0.0
        %568 = vmatprep.subr.mxu0 0.0
        %569 = vmatpush1.xpose.msra.mxu0 0.0
        %570 = vmatprep.subr.mxu0 0.0
        %571 = vmatpush1.xpose.msra.mxu0 0.0
        %572 = vmatprep.subr.mxu0 0.0
        %573 = vmatpush1.xpose.msra.mxu0 0.0
        %574 = vmatprep.subr.mxu0 0.0
        %575 = vmatpush1.xpose.msra.mxu0 0.0
        %576 = vmatprep.subr.mxu0 0.0
        %577 = vmatpush1.xpose.msra.mxu0 0.0
        %578 = vmatprep.subr.mxu0 0.0
        %579 = vmatpush1.xpose.msra.mxu0 0.0
        %580 = vmatprep.subr.mxu0 0.0
        %581 = vmatpush1.xpose.msra.mxu0 0.0
        %582 = vmatprep.subr.mxu0 0.0
        %583 = vmatpush1.xpose.msra.mxu0 0.0
        %584 = vmatprep.subr.mxu0 0.0
        %585 = vmatpush1.xpose.msra.mxu0 0.0
        %586 = vmatprep.subr.mxu0 0.0
        %587 = vmatpush1.xpose.msra.mxu0 0.0
        %588 = vmatprep.subr.mxu0 0.0
        %589 = vmatpush1.xpose.msra.mxu0 0.0
        %590 = vmatprep.subr.mxu0 0.0
        %591 = vmatpush1.xpose.msra.mxu0 0.0
        %592 = vmatprep.mubr.f32.mxu0 0.0
        %593 = vmatmul.mubr.f32.gmra.mrb[0].mxu0 %v520
        %v594 = vpop.f32.mrb[0].mxu0
        %v595 = vadd.f32 0.0, %v594
        %v596 = vpop.f32.mrb[0].mxu0
        %597 = vdwg.mxu0
        %v598 = vlaneseq
        %v599 = vshrl.u32 %v598, 7
        %v600 = vand.u32 %v599, 1
        %v601 = vand.u32 %v474, 1
        %vm602 = vcmp.eq.s32.totalorder %v600, %v601
        %v603 = vsel %vm602, %v595, -1e+30
        %vm604 = vcmask 130048
        %v605 = vsel %vm604, %v603, -inf
        %606 = vmax.xlane.f32.xlu0 %v605
        %v607 = vpop.xlane.xlu0 %606
        %v608 = vsub.f32 %v603, %v607
        %v609 = vmul.f32 %v608, 1.442695
        %v610 = vpow.pop %v609
        %v611 = vsel %vm604, %v610, 0.0
        %612 = vadd.xlane.f32.xlu0 %v611
        %v613 = vpop.xlane.xlu0 %612
        %v614 = vrcp.pop %v613
        %v615 = vmul.f32 %v610, %v614
        %v617 = vsel %vm604, %v615, 0
        %619 = vmatprep.subr.mxu0 0.0
        %620 = vmatpush1.msra.mxu0 %v465
        %621 = vmatprep.subr.mxu0 0.0
        %622 = vmatpush1.msra.mxu0 %v470
        %623 = vmatprep.subr.mxu0 0.0
        %624 = vmatpush1.msra.mxu0 0.0
        %625 = vmatprep.subr.mxu0 0.0
        %626 = vmatpush1.msra.mxu0 0.0
        %627 = vmatprep.subr.mxu0 0.0
        %628 = vmatpush1.msra.mxu0 0.0
        %629 = vmatprep.subr.mxu0 0.0
        %630 = vmatpush1.msra.mxu0 0.0
        %631 = vmatprep.subr.mxu0 0.0
        %632 = vmatpush1.msra.mxu0 0.0
        %633 = vmatprep.subr.mxu0 0.0
        %634 = vmatpush1.msra.mxu0 0.0
        %635 = vmatprep.subr.mxu0 0.0
        %636 = vmatpush1.msra.mxu0 0.0
        %637 = vmatprep.subr.mxu0 0.0
        %638 = vmatpush1.msra.mxu0 0.0
        %639 = vmatprep.subr.mxu0 0.0
        %640 = vmatpush1.msra.mxu0 0.0
        %641 = vmatprep.subr.mxu0 0.0
        %642 = vmatpush1.msra.mxu0 0.0
        %643 = vmatprep.subr.mxu0 0.0
        %644 = vmatpush1.msra.mxu0 0.0
        %645 = vmatprep.subr.mxu0 0.0
        %646 = vmatpush1.msra.mxu0 0.0
        %647 = vmatprep.subr.mxu0 0.0
        %648 = vmatpush1.msra.mxu0 0.0
        %649 = vmatprep.subr.mxu0 0.0
        %650 = vmatpush1.msra.mxu0 0.0
        %651 = vmatprep.subr.mxu0 0.0
        %652 = vmatpush1.msra.mxu0 0.0
        %653 = vmatprep.subr.mxu0 0.0
        %654 = vmatpush1.msra.mxu0 0.0
        %655 = vmatprep.subr.mxu0 0.0
        %656 = vmatpush1.msra.mxu0 0.0
        %657 = vmatprep.subr.mxu0 0.0
        %658 = vmatpush1.msra.mxu0 0.0
        %659 = vmatprep.subr.mxu0 0.0
        %660 = vmatpush1.msra.mxu0 0.0
        %661 = vmatprep.subr.mxu0 0.0
        %662 = vmatpush1.msra.mxu0 0.0
        %663 = vmatprep.subr.mxu0 0.0
        %664 = vmatpush1.msra.mxu0 0.0
        %665 = vmatprep.subr.mxu0 0.0
        %666 = vmatpush1.msra.mxu0 0.0
        %667 = vmatprep.subr.mxu0 0.0
        %668 = vmatpush1.msra.mxu0 0.0
        %669 = vmatprep.subr.mxu0 0.0
        %670 = vmatpush1.msra.mxu0 0.0
        %671 = vmatprep.subr.mxu0 0.0
        %672 = vmatpush1.msra.mxu0 0.0
        %673 = vmatprep.subr.mxu0 0.0
        %674 = vmatpush1.msra.mxu0 0.0
        %675 = vmatprep.subr.mxu0 0.0
        %676 = vmatpush1.msra.mxu0 0.0
        %677 = vmatprep.subr.mxu0 0.0
        %678 = vmatpush1.msra.mxu0 0.0
        %679 = vmatprep.subr.mxu0 0.0
        %680 = vmatpush1.msra.mxu0 0.0
        %681 = vmatprep.subr.mxu0 0.0
        %682 = vmatpush1.msra.mxu0 0.0
        %683 = vmatprep.mubr.f32.mxu0 0.0
        %684 = vmatmul.mubr.f32.gmra.mrb[0].mxu0 %v617
        %v685 = vpop.f32.mrb[0].mxu0
        %v686 = vadd.f32 0.0, %v685
        %v687 = vpop.f32.mrb[0].mxu0
        %688 = vdwg.mxu0
        %v690 = vcombine.high %v686, %v686
        %v692 = vunpack.c.l.s4 1983009808
        %v693 = vunpack.c.0.s8 %v692
        %v694 = vlaneseq
        %v695 = vshrl.u32 %v694, 7
        %v696 = vsub.s32 %v693, %v695
        %v697 = vrot.slane %v686, %v696
        %v699 = vunpack.c.l.s4 1983009808
        %v700 = vunpack.c.0.s8 %v699
        %v701 = vlaneseq
        %v702 = vshrl.u32 %v701, 7
        %v703 = vsub.s32 %v700, %v702
        %v704 = vrot.slane %v690, %v703
        %v705 = vcombine.high %v697, %v697
        %v706 = vcombine.high %v704, %v704
        %v711 = vmul.f32 %v697, %v491
        %v712 = vmul.f32 %v705, %v492
        %v713 = vmul.f32 %v704, %v493
        %v714 = vmul.f32 %v706, %v494
        %vm715 = vcmask 254976
        %v716 = vsel %vm715, %v711, 0.0
        %v717 = vsel %vm715, %v712, 0.0
        %v718 = vadd.f32 %v716, %v717
        %v719 = vsel %vm715, %v713, 0.0
        %v720 = vadd.f32 %v718, %v719
        %v721 = vsel %vm715, %v714, 0.0
        %v722 = vadd.f32 %v720, %v721
        %v723 = vlaneseq
        %v724 = vshrl.u32 %v723, 7
        %v725 = vsub.s32 0, %v724
        %v726 = vrot.slane %v228, %v725
        %v728 = vsel %vm235, %v722, 0
        %730 = vmatprep.subr.mxu0 0.0
        %731 = vmatpush1.msra.mxu0 %v221
        %732 = vmatprep.subr.mxu0 0.0
        %733 = vmatpush1.msra.mxu0 %v222
        %734 = vmatprep.subr.mxu0 0.0
        %735 = vmatpush1.msra.mxu0 %v223
        %736 = vmatprep.subr.mxu0 0.0
        %737 = vmatpush1.msra.mxu0 %v224
        %738 = vmatprep.subr.mxu0 0.0
        %739 = vmatpush1.msra.mxu0 0.0
        %740 = vmatprep.subr.mxu0 0.0
        %741 = vmatpush1.msra.mxu0 0.0
        %742 = vmatprep.subr.mxu0 0.0
        %743 = vmatpush1.msra.mxu0 0.0
        %744 = vmatprep.subr.mxu0 0.0
        %745 = vmatpush1.msra.mxu0 0.0
        %746 = vmatprep.subr.mxu0 0.0
        %747 = vmatpush1.msra.mxu0 0.0
        %748 = vmatprep.subr.mxu0 0.0
        %749 = vmatpush1.msra.mxu0 0.0
        %750 = vmatprep.subr.mxu0 0.0
        %751 = vmatpush1.msra.mxu0 0.0
        %752 = vmatprep.subr.mxu0 0.0
        %753 = vmatpush1.msra.mxu0 0.0
        %754 = vmatprep.subr.mxu0 0.0
        %755 = vmatpush1.msra.mxu0 0.0
        %756 = vmatprep.subr.mxu0 0.0
        %757 = vmatpush1.msra.mxu0 0.0
        %758 = vmatprep.subr.mxu0 0.0
        %759 = vmatpush1.msra.mxu0 0.0
        %760 = vmatprep.subr.mxu0 0.0
        %761 = vmatpush1.msra.mxu0 0.0
        %762 = vmatprep.subr.mxu0 0.0
        %763 = vmatpush1.msra.mxu0 0.0
        %764 = vmatprep.subr.mxu0 0.0
        %765 = vmatpush1.msra.mxu0 0.0
        %766 = vmatprep.subr.mxu0 0.0
        %767 = vmatpush1.msra.mxu0 0.0
        %768 = vmatprep.subr.mxu0 0.0
        %769 = vmatpush1.msra.mxu0 0.0
        %770 = vmatprep.subr.mxu0 0.0
        %771 = vmatpush1.msra.mxu0 0.0
        %772 = vmatprep.subr.mxu0 0.0
        %773 = vmatpush1.msra.mxu0 0.0
        %774 = vmatprep.subr.mxu0 0.0
        %775 = vmatpush1.msra.mxu0 0.0
        %776 = vmatprep.subr.mxu0 0.0
        %777 = vmatpush1.msra.mxu0 0.0
        %778 = vmatprep.subr.mxu0 0.0
        %779 = vmatpush1.msra.mxu0 0.0
        %780 = vmatprep.subr.mxu0 0.0
        %781 = vmatpush1.msra.mxu0 0.0
        %782 = vmatprep.subr.mxu0 0.0
        %783 = vmatpush1.msra.mxu0 0.0
        %784 = vmatprep.subr.mxu0 0.0
        %785 = vmatpush1.msra.mxu0 0.0
        %786 = vmatprep.subr.mxu0 0.0
        %787 = vmatpush1.msra.mxu0 0.0
        %788 = vmatprep.subr.mxu0 0.0
        %789 = vmatpush1.msra.mxu0 0.0
        %790 = vmatprep.subr.mxu0 0.0
        %791 = vmatpush1.msra.mxu0 0.0
        %792 = vmatprep.subr.mxu0 0.0
        %793 = vmatpush1.msra.mxu0 0.0
        %794 = vmatprep.mubr.f32.mxu0 0.0
        %795 = vmatmul.mubr.f32.gmra.mrb[0].mxu0 %v728
        %v796 = vpop.f32.mrb[0].mxu0
        %v797 = vadd.f32 %v726, %v796
        %v798 = vpop.f32.mrb[0].mxu0
        %799 = vdwg.mxu0
        %v800 = vadd.f32 %v206, %v797
        %v801 = vsel %vm715, %v800, 0.0
        %802 = vadd.xlane.f32.xlu0 %v801
        %v803 = vpop.xlane.xlu0 %802
        %v804 = vrcp.pop 32.0
        %v805 = vmul.f32 %v803, %v804
        %v806 = vsub.f32 %v800, %v805
        %v807 = vmul.f32 %v806, %v806
        %v808 = vsel %vm715, %v807, 0.0
        %809 = vadd.xlane.f32.xlu0 %v808
        %v810 = vpop.xlane.xlu0 %809
        %v811 = vmul.f32 %v810, %v804
        %v812 = vadd.f32 %v811, 1e-05
        %v813 = vrsqrt.pop %v812
        %v814 = vmul.f32 %v806, %v813
        %v815 = vlaneseq
        %v816 = vshrl.u32 %v815, 7
        %v817 = vsub.s32 0, %v816
        %v818 = vrot.slane %v229, %v817
        %v819 = vmul.f32 %v814, %v818
        %v820 = vlaneseq
        %v821 = vshrl.u32 %v820, 7
        %v822 = vsub.s32 0, %v821
        %v823 = vrot.slane %v230, %v822
        %v824 = vadd.f32 %v819, %v823
        %825 = vst.msk [vmem:[%s191] sm:$0x3] %vm715, %v824
        %s826 = sand.u32 %s103, 1
        %s827 = scalar_lea.sflag [#allocation3], %s826
        %s828 = sand.u32 %s103, 1
        %s829 = smul.addr %s828, 2
        %s830 = scalar_lea.vmem [#allocation2], %s829
        // Predicated region
        $region33: #{tpu_custom_call.1} parent=31 // pred_check
          %p831 = pneg %p113
        $region34: #{tpu_custom_call.1} parent=31 // pred_check_branch
          %833 = sbr.rel (%p831) target = $region36
        $region35: #{tpu_custom_call.1} parent=31 // pred_region
          %s835 = ssub.s32 32, 32
          %836 = vsyncadd %s827, %s835
          %s837 = smul.addr %s17, 32
          %s838 = scalar_lea.hbm %s3, %s837
          %s840 = sshll.u32 %s830, 4
          %s841 = int_to_ptr.vmem [resolvable:$true] %s840
          %843 = dma.vmem_to_hbm [thread:$0]  %s841, 32, %s838, %s827
        $region36: #{tpu_custom_call.1} parent=31 // pred_fallthru
          _
      $region32: #{tpu_custom_call.1} parent=5 // pred_fallthru
        _
      %p844 = scmp.le.s32.totalorder 2, %s12
      // Predicated region
      $region37: #{tpu_custom_call.1} parent=5 // pred_check
        %p845 = pneg %p844
      $region38: #{tpu_custom_call.1} parent=5 // pred_check_branch
        %847 = sbr.rel (%p845) target = $region40
      $region39: #{tpu_custom_call.1} parent=5 // pred_region
        %s848 = ssub.s32 %s12, 2
        // Predicated region
        $region41: #{tpu_custom_call.1} parent=39 // pred_check
          %p849 = pneg %p119
        $region42: #{tpu_custom_call.1} parent=39 // pred_check_branch
          %851 = sbr.rel (%p849) target = $region44
        $region43: #{tpu_custom_call.1} parent=39 // pred_region
          %s852 = sand.u32 %s104, 1
          %s853 = scalar_lea.sflag [#allocation3], %s852
          %s854 = sand.u32 %s104, 1
          %s855 = smul.addr %s854, 2
          %s856 = scalar_lea.vmem [#allocation2], %s855
          %857 = dma.done %s853, 32
        $region44: #{tpu_custom_call.1} parent=39 // pred_fallthru
          _
      $region40: #{tpu_custom_call.1} parent=5 // pred_fallthru
        _
    $region6: #{tpu_custom_call.1} parent=1 // loop_footer
      %s16 = sadd.s32 1, %s12
    $region7: #{tpu_custom_call.1} parent=1 // loop_footer_branch
      %11 = sbr.rel target = $region3
    $region8: #{tpu_custom_call.1} parent=1 // loop_exit
      _
    %858 = vsyncpa [#allocation3], 1
    %s859 = scalar_lea.sflag [#allocation3], 1
    %860 = vsyncpa %s859, 1

</llo_original>
